<compile_context>
chip_gen: v7x
topology: tpu7x:2x2x1
jax: 0.10.0
libtpu: 0.0.40
codegen_flags: <defaults>
</compile_context>

<pallas_src>
import math
import jax
import jax.numpy as jnp
from jax import lax
from jax.experimental import pallas as pl
from jax.experimental.pallas import tpu as pltpu


def resblock_kernel(x_ref, w_ref, b_ref, o_ref):
    # x_ref : (tm, S)   input rows, full feature dim, f32
    # w_ref : (tn, S)   lin1 weight slab in PyTorch (out, in) layout (NOT transposed)
    # b_ref : (1, tn)   lin1 bias slab, f32
    # o_ref : (tm, tn)  output tile
    x = x_ref[...]                                      # f32
    h = jnp.maximum(x, 0.0).astype(w_ref.dtype)         # relu, cast to weight dtype for MXU
    # relu(x) @ W.T : contract the feature dim of both operands on the MXU.
    out = lax.dot_general(
        h, w_ref[...],
        dimension_numbers=(((1,), (1,)), ((), ())),
        preferred_element_type=jnp.float32)             # f32 accumulation
    out = out + b_ref[...].astype(jnp.float32)          # + b1 (f32)

    tn = o_ref.shape[-1]
    s_full = x_ref.shape[-1]
    if tn == s_full:                                    # static (trace-time) branch
        x_res = x
    else:
        j = pl.program_id(1)
        x_res = x_ref[:, pl.ds(pl.multiple_of(j * tn, tn), tn)]
    o_ref[...] = (out + x_res).astype(o_ref.dtype)      # residual uses pre-ReLU x


def resblock_forward(x, w1, b1, *, block_m=512, block_n=512):
    """x: (B, S) f32; w1: (S, S) PyTorch (out, in) layout, f32 or bf16; b1: (S,)."""
    B, S = x.shape
    assert w1.shape == (S, S) and b1.shape == (S,)

    tm = min(block_m, B)                 # batch tile (multiple of 8, or == B)
    tn = min(block_n, S)                 # output-feature tile
    if S % tn != 0 or tn % 128 != 0:     # keep lane tiles 128-dense, else full S
        tn = S

    grid = (pl.cdiv(B, tm), pl.cdiv(S, tn))
    b = b1.reshape(1, S).astype(jnp.float32)

    w_bytes = jnp.dtype(w1.dtype).itemsize
    x_bytes = x.dtype.itemsize
    cost = pl.CostEstimate(
        flops=2 * B * S * S,
        transcendentals=0,
        bytes_accessed=2 * B * S * x_bytes + S * S * w_bytes + S * 4,
    )

    # Rough double-buffered VMEM footprint; only raise the scoped limit if the
    # default (~32 MiB) would not fit (relevant for large S, esp. v7x's 64 MiB).
    vmem_est = (2 * tm * S * x_bytes + 2 * tm * tn * x_bytes
                + 2 * tn * S * w_bytes + 2 * tn * 4)
    vmem_limit = None
    if vmem_est > 30 * 1024 * 1024:
        vmem_limit = min(int(vmem_est * 1.25), 64 * 1024 * 1024)

    return pl.pallas_call(
        resblock_kernel,
        out_shape=jax.ShapeDtypeStruct((B, S), x.dtype),
        grid_spec=pltpu.PrefetchScalarGridSpec(
            num_scalar_prefetch=0,
            grid=grid,
            in_specs=[
                pl.BlockSpec((tm, S), lambda i, j: (i, 0)),   # x rows, full K
                pl.BlockSpec((tn, S), lambda i, j: (j, 0)),   # W slab, (out, in) layout
                pl.BlockSpec((1, tn), lambda i, j: (0, j)),   # bias slab
            ],
            out_specs=pl.BlockSpec((tm, tn), lambda i, j: (i, j)),
        ),
        compiler_params=pltpu.CompilerParams(
            dimension_semantics=("parallel", "parallel"),
            vmem_limit_bytes=vmem_limit),
        cost_estimate=cost,
    )(x, w1, b)


def init_resblock_params(key, size):
    """Mirrors _layer_init: lin1.weight ~ trunc_normal(std=sqrt(1/size)), bias = 0.
       (lin2 is created in __init__ but never used in forward.)"""
    k1, k2 = jax.random.split(key)
    std = math.sqrt(1.0 / size)
    w1 = jax.random.truncated_normal(k1, -2.0, 2.0, (size, size), jnp.float32) * std
    b1 = jnp.zeros((size,), jnp.float32)
    w2 = jax.random.truncated_normal(k2, -2.0, 2.0, (size, size), jnp.float32) * std
    b2 = jnp.zeros((size,), jnp.float32)
    return (w1, b1), (w2, b2)


if __name__ == "__main__":
    key = jax.random.PRNGKey(0)
    kx, kp = jax.random.split(key)

    B, S = 1024, 128
    x = jax.random.normal(kx, (B, S), jnp.float32)
    (w1, b1), _ = init_resblock_params(kp, S)       # f32 master params
    w1_bf16 = w1.astype(jnp.bfloat16)               # cast once, outside the hot path

    # bf16-weight path (bandwidth-optimized), batch-tiled grid.
    y = jax.block_until_ready(resblock_forward(x, w1_bf16, b1))

    # Reference with the same bf16-rounded matmul operands (f32 accumulation).
    h_ref = jnp.maximum(x, 0.0).astype(jnp.bfloat16).astype(jnp.float32)
    y_ref = h_ref @ w1_bf16.astype(jnp.float32).T + b1 + x
    assert y.shape == (B, S) and y.dtype == x.dtype
    assert jnp.allclose(y, y_ref, atol=2e-3, rtol=2e-3)

    # f32-weight path at the original tiny shape (single tile, exercises tm==B).
    xb = x[:8]
    y2 = jax.block_until_ready(resblock_forward(xb, w1, b1))
    y2_ref = jnp.maximum(xb, 0.0) @ w1.T + b1 + xb
    assert jnp.allclose(y2, y2_ref, atol=1e-4, rtol=1e-4)

    print("KERNEL_OK")
</pallas_src>

<mosaic_0001>
module attributes {stable_mosaic.version = 11 : i64} {
  func.func @resblock_kernel(%arg0: i32, %arg1: i32, %arg2: memref<512x128xf32, #tpu.memory_space<vmem>>, %arg3: memref<128x128xbf16, #tpu.memory_space<vmem>>, %arg4: memref<1x128xf32, #tpu.memory_space<vmem>>, %arg5: memref<512x128xf32, #tpu.memory_space<vmem>>) attributes {dimension_semantics = [#tpu.dimension_semantics<parallel>, #tpu.dimension_semantics<parallel>], iteration_bounds = array<i64: 2, 1>, scalar_prefetch = 0 : i64, scratch_operands = 0 : i64, tpu.core_type = #tpu.core_type<tc>, window_params = [{transform_indices = @transform_0, window_bounds = array<i64: 512, 128>}, {transform_indices = @transform_1, window_bounds = array<i64: 128, 128>}, {transform_indices = @transform_2, window_bounds = array<i64: 1, 128>}, {transform_indices = @transform_3, window_bounds = array<i64: 512, 128>}]} {
    %c0 = arith.constant 0 : index
    %c0_0 = arith.constant 0 : index
    %0 = vector.load %arg2[%c0, %c0_0] : memref<512x128xf32, #tpu.memory_space<vmem>>, vector<512x128xf32>
    %cst = arith.constant 0.000000e+00 : f32
    %1 = vector.broadcast %cst : f32 to vector<512x128xf32>
    %2 = arith.maximumf %0, %1 : vector<512x128xf32>
    %3 = arith.truncf %2 : vector<512x128xf32> to vector<512x128xbf16>
    %c0_1 = arith.constant 0 : index
    %c0_2 = arith.constant 0 : index
    %4 = vector.load %arg3[%c0_1, %c0_2] : memref<128x128xbf16, #tpu.memory_space<vmem>>, vector<128x128xbf16>
    %cst_3 = arith.constant dense<0.000000e+00> : vector<512x128xf32>
    %5 = tpu.matmul %3, %4, %cst_3 {dimension_numbers = #tpu.dot_dimension_numbers<[1], [1], [0], [0], [0, 0, 1, 0], [], []>} : vector<512x128xbf16>, vector<128x128xbf16>, vector<512x128xf32> -> vector<512x128xf32>
    %c0_4 = arith.constant 0 : index
    %c0_5 = arith.constant 0 : index
    %6 = vector.load %arg4[%c0_4, %c0_5] : memref<1x128xf32, #tpu.memory_space<vmem>>, vector<1x128xf32>
    %7 = vector.broadcast %6 : vector<1x128xf32> to vector<512x128xf32>
    %8 = arith.addf %5, %7 : vector<512x128xf32>
    %9 = arith.addf %8, %0 : vector<512x128xf32>
    %c0_6 = arith.constant 0 : index
    %c0_7 = arith.constant 0 : index
    %10 = vector.load %arg5[%c0_6, %c0_7] : memref<512x128xf32, #tpu.memory_space<vmem>>, vector<512x128xf32>
    tpu.vector_store %arg5[%c0_6, %c0_7], %9 {strides = array<i32>} : memref<512x128xf32, #tpu.memory_space<vmem>>, vector<512x128xf32>,
    return
  }
  func.func @transform_0(%arg0: i32, %arg1: i32) -> (i32, i32) {
    %c0_i32 = arith.constant 0 : i32
    %c0_i32_0 = arith.constant 0 : i32
    return %arg0, %c0_i32 : i32, i32
  }
  func.func @transform_1(%arg0: i32, %arg1: i32) -> (i32, i32) {
    %c0_i32 = arith.constant 0 : i32
    %c0_i32_0 = arith.constant 0 : i32
    return %arg1, %c0_i32 : i32, i32
  }
  func.func @transform_2(%arg0: i32, %arg1: i32) -> (i32, i32) {
    %c0_i32 = arith.constant 0 : i32
    %c0_i32_0 = arith.constant 0 : i32
    return %c0_i32, %arg1 : i32, i32
  }
  func.func @transform_3(%arg0: i32, %arg1: i32) -> (i32, i32) {
    %c0_i32 = arith.constant 0 : i32
    return %arg0, %arg1 : i32, i32
  }
}

</mosaic_0001>

<llo_original>
// kernel: tpu_custom_call.1
$region0: #{tpu_custom_call.1}
  #allocation0 [shape = 'u32[]', space=smem, size = 0x4, offset = 0x4, fixed_abs, tag = 'smem constant byte address 0x4 - core index']
  #allocation1 [shape = 'u32[144,128]{1,0:T(1,128)}', space=vmem, size = 0x12000, scoped, tag = 'internal scratch']
  %s0 = inlined_call_operand.hbm [shape: f32[1024,128], index: 0, kind: input, shape index: {}]
  %s1 = inlined_call_operand.hbm [shape: bf16[128,128], index: 1, kind: input, shape index: {}]
  %s2 = inlined_call_operand.vmem [shape: f32[1,128], index: 2, kind: input, shape index: {}]
  %s3 = inlined_call_operand.hbm [shape: f32[1024,128], index: 3, kind: output, shape index: {}]
  %s4 = sld [smem:[#allocation0]]
  $region53: #{tpu_custom_call.1} parent=0
    _
  %s6 = ssub.s32 1, %s4
  %s7 = scalar_select 0, %s6, %s4
  $region1: #{tpu_custom_call.1} parent=0
    #allocation2 [shape = 'u8[524288]{0}', space=vmem, size = 0x80000, scoped, tag = 'input window, operand 0']
    #allocation3 [shape = 's32[2]{0}', space=sflag, size = 0x8, scoped, tag = 'scoped memory for tpu_custom_call.1']
    #allocation4 [shape = 's32[2]{0}', space=sflag, size = 0x8, scoped, tag = 'scoped memory for tpu_custom_call.1']
    #allocation5 [shape = 'u8[32768]{0}', space=vmem, size = 0x8000, scoped, tag = 'input window, operand 1, single buffered']
    #allocation6 [shape = 's32[1]{0}', space=sflag, size = 0x4, scoped, tag = 'scoped memory for tpu_custom_call.1']
    #allocation7 [shape = 'u8[524288]{0}', space=vmem, size = 0x80000, scoped, tag = 'output window, operand 0']
    %8 = vsyncpa [#allocation3], 0
    %s9 = scalar_lea.sflag [#allocation3], 1
    %10 = vsyncpa %s9, 0
    %11 = vsyncpa [#allocation6], 0
    %12 = vsyncpa [#allocation4], 0
    %s13 = scalar_lea.sflag [#allocation4], 1
    %14 = vsyncpa %s13, 0
    loop: start=0, step=1, limit=4
    $region2: #{tpu_custom_call.1} parent=1 // loop_pre_header
      _
    $region3: #{tpu_custom_call.1} parent=1 // loop_header
      %s16 = sphi 0, %s20
      %p17 = scmp.ge.s32.totalorder %s16, 4
      %s23 = sphi 0, %s35
      %s24 = sphi 0, %s31
      %s25 = sphi 0, %s23
      %s26 = sphi 0, %s24
      %s27 = sphi 0, %s25
      %s28 = sphi 0, %s26
      %s38 = sphi 0, %s40
      %s41 = sphi 0, %s38
      %s42 = sphi 0, %s41
      %s58 = sphi 0, %s42
      %s64 = sphi 0, %s66
      %s67 = sphi 0, %s64
      %s68 = sphi 0, %s67
      %s84 = sphi 0, %s68
      %s90 = sphi 0, %s92
      %s93 = sphi 0, %s90
      %s94 = sphi 0, %s93
      %s110 = sphi 0, %s94
      %s118 = sphi 0, %s120
      %s121 = sphi 0, %s118
      %s122 = sphi 0, %s121
      %s138 = sphi 0, %s122
    $region4: #{tpu_custom_call.1} parent=1 // loop_header_branch
      %19 = sbr.rel (%p17) target = $region8
    $region5: #{tpu_custom_call.1} parent=1 // loop_body
      %s21 = ssub.s32 %s16, 1
      %s22 = ssub.s32 %s16, 2
      %s29 = sadd.s32 1, %s24
      %p30 = scmp.ge.s32.totalorder %s29, 1
      %s31 = scalar_select %p30, 0, %s29
      %s32 = sadd.s32 1, %s23
      %s33 = scalar_select %p30, %s32, %s23
      %p34 = scmp.ge.s32.totalorder %s33, 2
      %s35 = scalar_select %p34, 0, %s33
      %s36 = ssub.s32 %s23, %s35
      %p37 = scmp.eq.s32.totalorder %s36, 0
      %s39 = sadd.s32 %s38, 1
      %s40 = scalar_select %p37, %s38, %s39
      %p43 = pneg %p37
      %p44 = scmp.eq.s32.totalorder %s16, 1
      %p45 = por %p43, %p44
      %p46 = scmp.ne.s32.totalorder %s38, %s41
      %p47 = scmp.eq.s32.totalorder %s16, 0
      %p48 = por %p46, %p47
      %p49 = scmp.ne.s32.totalorder %s38, %s41
      %p50 = scmp.eq.s32.totalorder %s21, 1
      %p51 = por %p49, %p50
      %p52 = scmp.ne.s32.totalorder %s41, %s42
      %p53 = scmp.eq.s32.totalorder %s21, 0
      %p54 = por %p52, %p53
      %p55 = scmp.ne.s32.totalorder %s41, %s42
      %p56 = scmp.eq.s32.totalorder %s22, 1
      %p57 = por %p55, %p56
      %p59 = scmp.ne.s32.totalorder %s42, %s58
      %p60 = scmp.eq.s32.totalorder %s22, 0
      %p61 = por %p59, %p60
      %s62 = ssub.s32 %s24, %s31
      %p63 = scmp.eq.s32.totalorder %s62, 0
      %s65 = sadd.s32 %s64, 1
      %s66 = scalar_select %p63, %s64, %s65
      %p69 = pneg %p63
      %p70 = scmp.eq.s32.totalorder %s16, 1
      %p71 = por %p69, %p70
      %p72 = scmp.ne.s32.totalorder %s64, %s67
      %p73 = scmp.eq.s32.totalorder %s16, 0
      %p74 = por %p72, %p73
      %p75 = scmp.ne.s32.totalorder %s64, %s67
      %p76 = scmp.eq.s32.totalorder %s21, 1
      %p77 = por %p75, %p76
      %p78 = scmp.ne.s32.totalorder %s67, %s68
      %p79 = scmp.eq.s32.totalorder %s21, 0
      %p80 = por %p78, %p79
      %p81 = scmp.ne.s32.totalorder %s67, %s68
      %p82 = scmp.eq.s32.totalorder %s22, 1
      %p83 = por %p81, %p82
      %p85 = scmp.ne.s32.totalorder %s68, %s84
      %p86 = scmp.eq.s32.totalorder %s22, 0
      %p87 = por %p85, %p86
      %s88 = ssub.s32 %s24, %s31
      %p89 = scmp.eq.s32.totalorder %s88, 0
      %s91 = sadd.s32 %s90, 1
      %s92 = scalar_select %p89, %s90, %s91
      %p95 = pneg %p89
      %p96 = scmp.eq.s32.totalorder %s16, 1
      %p97 = por %p95, %p96
      %p98 = scmp.ne.s32.totalorder %s90, %s93
      %p99 = scmp.eq.s32.totalorder %s16, 0
      %p100 = por %p98, %p99
      %p101 = scmp.ne.s32.totalorder %s90, %s93
      %p102 = scmp.eq.s32.totalorder %s21, 1
      %p103 = por %p101, %p102
      %p104 = scmp.ne.s32.totalorder %s93, %s94
      %p105 = scmp.eq.s32.totalorder %s21, 0
      %p106 = por %p104, %p105
      %p107 = scmp.ne.s32.totalorder %s93, %s94
      %p108 = scmp.eq.s32.totalorder %s22, 1
      %p109 = por %p107, %p108
      %p111 = scmp.ne.s32.totalorder %s94, %s110
      %p112 = scmp.eq.s32.totalorder %s22, 0
      %p113 = por %p111, %p112
      %s114 = ssub.s32 %s23, %s35
      %s115 = ssub.s32 %s24, %s31
      %s116 = sor.u32 %s114, %s115
      %p117 = scmp.eq.s32.totalorder %s116, 0
      %s119 = sadd.s32 %s118, 1
      %s120 = scalar_select %p117, %s118, %s119
      %p123 = pneg %p117
      %p124 = scmp.eq.s32.totalorder %s16, 1
      %p125 = por %p123, %p124
      %p126 = scmp.ne.s32.totalorder %s118, %s121
      %p127 = scmp.eq.s32.totalorder %s16, 0
      %p128 = por %p126, %p127
      %p129 = scmp.ne.s32.totalorder %s118, %s121
      %p130 = scmp.eq.s32.totalorder %s21, 1
      %p131 = por %p129, %p130
      %p132 = scmp.ne.s32.totalorder %s121, %s122
      %p133 = scmp.eq.s32.totalorder %s21, 0
      %p134 = por %p132, %p133
      %p135 = scmp.ne.s32.totalorder %s121, %s122
      %p136 = scmp.eq.s32.totalorder %s22, 1
      %p137 = por %p135, %p136
      %p139 = scmp.ne.s32.totalorder %s122, %s138
      %p140 = scmp.eq.s32.totalorder %s22, 0
      %p141 = por %p139, %p140
      %p142 = scmp.le.s32.totalorder 1, %s16
      %p143 = scmp.lt.s32.totalorder %s16, 3
      %p144 = pnand %p142, %p143
      %p145 = pneg %p144
      // Predicated region
      $region9: #{tpu_custom_call.1} parent=5 // pred_check
        _
      $region10: #{tpu_custom_call.1} parent=5 // pred_check_branch
        %147 = sbr.rel (%p144) target = $region12
      $region11: #{tpu_custom_call.1} parent=5 // pred_region
        %s148 = ssub.s32 %s16, 1
        // Predicated region
        $region13: #{tpu_custom_call.1} parent=11 // pred_check
          %p149 = pneg %p80
        $region14: #{tpu_custom_call.1} parent=11 // pred_check_branch
          %151 = sbr.rel (%p149) target = $region16
        $region15: #{tpu_custom_call.1} parent=11 // pred_region
          %s152 = smul.u32 16, %s26
          %s154 = ssub.s32 1024, 1024
          %155 = vsyncadd [#allocation6], %s154
          %s156 = smul.addr %s152, 64
          %s157 = scalar_lea.hbm %s1, %s156
          %s158 = sshll.u32 [#allocation5], 4
          %s159 = int_to_ptr.vmem [resolvable:$true] %s158
          %164 = dma.hbm_to_vmem [thread:$0]  %s157, 1024, %s159, [#allocation6], 64, 64, 4
        $region16: #{tpu_custom_call.1} parent=11 // pred_fallthru
          _
        // Predicated region
        $region17: #{tpu_custom_call.1} parent=11 // pred_check
          %p165 = pneg %p106
        $region18: #{tpu_custom_call.1} parent=11 // pred_check_branch
          %167 = sbr.rel (%p165) target = $region20
        $region19: #{tpu_custom_call.1} parent=11 // pred_region
          %p168 = scmp.lt.s32.totalorder %s26, 0
          %s169 = scalar_select %p168, %s26, 0
          %s170 = scalar_lea.vmem %s2, %s169
        $region20: #{tpu_custom_call.1} parent=11 // pred_fallthru
          _
      $region12: #{tpu_custom_call.1} parent=5 // pred_fallthru
        _
      %p171 = scmp.lt.s32.totalorder %s16, 2
      // Predicated region
      $region21: #{tpu_custom_call.1} parent=5 // pred_check
        %p172 = pneg %p171
      $region22: #{tpu_custom_call.1} parent=5 // pred_check_branch
        %174 = sbr.rel (%p172) target = $region24
      $region23: #{tpu_custom_call.1} parent=5 // pred_region
        // Predicated region
        $region25: #{tpu_custom_call.1} parent=23 // pred_check
          %p175 = pneg %p48
        $region26: #{tpu_custom_call.1} parent=23 // pred_check_branch
          %177 = sbr.rel (%p175) target = $region28
        $region27: #{tpu_custom_call.1} parent=23 // pred_region
          %s178 = sand.u32 %s38, 1
          %s179 = scalar_lea.sflag [#allocation3], %s178
          %s180 = sand.u32 %s38, 1
          %s181 = smul.addr %s180, 512
          %s182 = scalar_lea.vmem [#allocation2], %s181
          %s183 = smul.u32 64, %s23
          %s185 = ssub.s32 8192, 8192
          %186 = vsyncadd %s179, %s185
          %s187 = smul.addr %s183, 128
          %s188 = scalar_lea.hbm %s0, %s187
          %s189 = sshll.u32 %s182, 4
          %s190 = int_to_ptr.vmem [resolvable:$true] %s189
          %195 = dma.hbm_to_vmem [thread:$0]  %s188, 8192, %s190, %s179, 128, 128, 8
        $region28: #{tpu_custom_call.1} parent=23 // pred_fallthru
          _
      $region24: #{tpu_custom_call.1} parent=5 // pred_fallthru
        _
      %p196 = scmp.le.s32.totalorder 1, %s16
      %p197 = scmp.lt.s32.totalorder %s16, 3
      %p198 = pnand %p196, %p197
      %p199 = pneg %p198
      // Predicated region
      $region29: #{tpu_custom_call.1} parent=5 // pred_check
        _
      $region30: #{tpu_custom_call.1} parent=5 // pred_check_branch
        %201 = sbr.rel (%p198) target = $region32
      $region31: #{tpu_custom_call.1} parent=5 // pred_region
        %s202 = ssub.s32 %s16, 1
        %s203 = sand.u32 %s41, 1
        %s204 = scalar_lea.sflag [#allocation3], %s203
        %s205 = sand.u32 %s41, 1
        %s206 = smul.addr %s205, 512
        %s207 = scalar_lea.vmem [#allocation2], %s206
        // Predicated region
        $region33: #{tpu_custom_call.1} parent=31 // pred_check
          %p208 = pneg %p54
        $region34: #{tpu_custom_call.1} parent=31 // pred_check_branch
          %210 = sbr.rel (%p208) target = $region36
        $region35: #{tpu_custom_call.1} parent=31 // pred_region
          %211 = dma.done %s204, 8192
        $region36: #{tpu_custom_call.1} parent=31 // pred_fallthru
          _
        // Predicated region
        $region37: #{tpu_custom_call.1} parent=31 // pred_check
          %p212 = pneg %p80
        $region38: #{tpu_custom_call.1} parent=31 // pred_check_branch
          %214 = sbr.rel (%p212) target = $region40
        $region39: #{tpu_custom_call.1} parent=31 // pred_region
          %215 = dma.done [#allocation6], 1024
        $region40: #{tpu_custom_call.1} parent=31 // pred_fallthru
          _
        %s216 = sand.u32 %s41, 1
        %s217 = scalar_lea.sflag [#allocation3], %s216
        %s218 = sand.u32 %s41, 1
        %s219 = smul.addr %s218, 512
        %s220 = scalar_lea.vmem [#allocation2], %s219
        %p221 = pneg %p54
        %p222 = pneg %p51
        %p223 = pneg %p80
        %p224 = pneg %p77
        %p225 = scmp.lt.s32.totalorder %s26, 0
        %s226 = scalar_select %p225, %s26, 0
        %s227 = scalar_lea.vmem %s2, %s226
        %p228 = pneg %p106
        %p229 = pneg %p103
        %p230 = pneg %p134
        %p231 = pneg %p131
        %s232 = sand.u32 %s121, 1
        %s233 = scalar_lea.sflag [#allocation4], %s232
        %s234 = sand.u32 %s121, 1
        %s235 = smul.addr %s234, 512
        %s236 = scalar_lea.vmem [#allocation7], %s235
        %s237 = smul.u32 64, %s25
        %s238 = smul.u32 16, %s26
        %p239 = scmp.lt.s32.totalorder %s26, 0
        %s240 = scalar_select %p239, %s26, 0
        %s241 = scalar_lea.vmem %s2, %s240
        %s242 = smul.u32 64, %s25
        %v244 = vld [vmem:[%s207] sm:$0xff]
        %v245 = vld [vmem:[%s207 + $0x8] sm:$0xff]
        %v246 = vld [vmem:[%s207 + $0x10] sm:$0xff]
        %v247 = vld [vmem:[%s207 + $0x18] sm:$0xff]
        %v248 = vld [vmem:[%s207 + $0x20] sm:$0xff]
        %v249 = vld [vmem:[%s207 + $0x28] sm:$0xff]
        %v250 = vld [vmem:[%s207 + $0x30] sm:$0xff]
        %v251 = vld [vmem:[%s207 + $0x38] sm:$0xff]
        %v252 = vld [vmem:[%s207 + $0x40] sm:$0xff]
        %v253 = vld [vmem:[%s207 + $0x48] sm:$0xff]
        %v254 = vld [vmem:[%s207 + $0x50] sm:$0xff]
        %v255 = vld [vmem:[%s207 + $0x58] sm:$0xff]
        %v256 = vld [vmem:[%s207 + $0x60] sm:$0xff]
        %v257 = vld [vmem:[%s207 + $0x68] sm:$0xff]
        %v258 = vld [vmem:[%s207 + $0x70] sm:$0xff]
        %v259 = vld [vmem:[%s207 + $0x78] sm:$0xff]
        %v260 = vld [vmem:[%s207 + $0x80] sm:$0xff]
        %v261 = vld [vmem:[%s207 + $0x88] sm:$0xff]
        %v262 = vld [vmem:[%s207 + $0x90] sm:$0xff]
        %v263 = vld [vmem:[%s207 + $0x98] sm:$0xff]
        %v264 = vld [vmem:[%s207 + $0xa0] sm:$0xff]
        %v265 = vld [vmem:[%s207 + $0xa8] sm:$0xff]
        %v266 = vld [vmem:[%s207 + $0xb0] sm:$0xff]
        %v267 = vld [vmem:[%s207 + $0xb8] sm:$0xff]
        %v268 = vld [vmem:[%s207 + $0xc0] sm:$0xff]
        %v269 = vld [vmem:[%s207 + $0xc8] sm:$0xff]
        %v270 = vld [vmem:[%s207 + $0xd0] sm:$0xff]
        %v271 = vld [vmem:[%s207 + $0xd8] sm:$0xff]
        %v272 = vld [vmem:[%s207 + $0xe0] sm:$0xff]
        %v273 = vld [vmem:[%s207 + $0xe8] sm:$0xff]
        %v274 = vld [vmem:[%s207 + $0xf0] sm:$0xff]
        %v275 = vld [vmem:[%s207 + $0xf8] sm:$0xff]
        %v276 = vld [vmem:[%s207 + $0x100] sm:$0xff]
        %v277 = vld [vmem:[%s207 + $0x108] sm:$0xff]
        %v278 = vld [vmem:[%s207 + $0x110] sm:$0xff]
        %v279 = vld [vmem:[%s207 + $0x118] sm:$0xff]
        %v280 = vld [vmem:[%s207 + $0x120] sm:$0xff]
        %v281 = vld [vmem:[%s207 + $0x128] sm:$0xff]
        %v282 = vld [vmem:[%s207 + $0x130] sm:$0xff]
        %v283 = vld [vmem:[%s207 + $0x138] sm:$0xff]
        %v284 = vld [vmem:[%s207 + $0x140] sm:$0xff]
        %v285 = vld [vmem:[%s207 + $0x148] sm:$0xff]
        %v286 = vld [vmem:[%s207 + $0x150] sm:$0xff]
        %v287 = vld [vmem:[%s207 + $0x158] sm:$0xff]
        %v288 = vld [vmem:[%s207 + $0x160] sm:$0xff]
        %v289 = vld [vmem:[%s207 + $0x168] sm:$0xff]
        %v290 = vld [vmem:[%s207 + $0x170] sm:$0xff]
        %v291 = vld [vmem:[%s207 + $0x178] sm:$0xff]
        %v292 = vld [vmem:[%s207 + $0x180] sm:$0xff]
        %v293 = vld [vmem:[%s207 + $0x188] sm:$0xff]
        %v294 = vld [vmem:[%s207 + $0x190] sm:$0xff]
        %v295 = vld [vmem:[%s207 + $0x198] sm:$0xff]
        %v296 = vld [vmem:[%s207 + $0x1a0] sm:$0xff]
        %v297 = vld [vmem:[%s207 + $0x1a8] sm:$0xff]
        %v298 = vld [vmem:[%s207 + $0x1b0] sm:$0xff]
        %v299 = vld [vmem:[%s207 + $0x1b8] sm:$0xff]
        %v300 = vld [vmem:[%s207 + $0x1c0] sm:$0xff]
        %v301 = vld [vmem:[%s207 + $0x1c8] sm:$0xff]
        %v302 = vld [vmem:[%s207 + $0x1d0] sm:$0xff]
        %v303 = vld [vmem:[%s207 + $0x1d8] sm:$0xff]
        %v304 = vld [vmem:[%s207 + $0x1e0] sm:$0xff]
        %v305 = vld [vmem:[%s207 + $0x1e8] sm:$0xff]
        %v306 = vld [vmem:[%s207 + $0x1f0] sm:$0xff]
        %v307 = vld [vmem:[%s207 + $0x1f8] sm:$0xff]
        %v308 = vmax.f32 %v244, 0.0
        %v309 = vmax.f32 %v245, 0.0
        %v310 = vmax.f32 %v246, 0.0
        %v311 = vmax.f32 %v247, 0.0
        %v312 = vmax.f32 %v248, 0.0
        %v313 = vmax.f32 %v249, 0.0
        %v314 = vmax.f32 %v250, 0.0
        %v315 = vmax.f32 %v251, 0.0
        %v316 = vmax.f32 %v252, 0.0
        %v317 = vmax.f32 %v253, 0.0
        %v318 = vmax.f32 %v254, 0.0
        %v319 = vmax.f32 %v255, 0.0
        %v320 = vmax.f32 %v256, 0.0
        %v321 = vmax.f32 %v257, 0.0
        %v322 = vmax.f32 %v258, 0.0
        %v323 = vmax.f32 %v259, 0.0
        %v324 = vmax.f32 %v260, 0.0
        %v325 = vmax.f32 %v261, 0.0
        %v326 = vmax.f32 %v262, 0.0
        %v327 = vmax.f32 %v263, 0.0
        %v328 = vmax.f32 %v264, 0.0
        %v329 = vmax.f32 %v265, 0.0
        %v330 = vmax.f32 %v266, 0.0
        %v331 = vmax.f32 %v267, 0.0
        %v332 = vmax.f32 %v268, 0.0
        %v333 = vmax.f32 %v269, 0.0
        %v334 = vmax.f32 %v270, 0.0
        %v335 = vmax.f32 %v271, 0.0
        %v336 = vmax.f32 %v272, 0.0
        %v337 = vmax.f32 %v273, 0.0
        %v338 = vmax.f32 %v274, 0.0
        %v339 = vmax.f32 %v275, 0.0
        %v340 = vmax.f32 %v276, 0.0
        %v341 = vmax.f32 %v277, 0.0
        %v342 = vmax.f32 %v278, 0.0
        %v343 = vmax.f32 %v279, 0.0
        %v344 = vmax.f32 %v280, 0.0
        %v345 = vmax.f32 %v281, 0.0
        %v346 = vmax.f32 %v282, 0.0
        %v347 = vmax.f32 %v283, 0.0
        %v348 = vmax.f32 %v284, 0.0
        %v349 = vmax.f32 %v285, 0.0
        %v350 = vmax.f32 %v286, 0.0
        %v351 = vmax.f32 %v287, 0.0
        %v352 = vmax.f32 %v288, 0.0
        %v353 = vmax.f32 %v289, 0.0
        %v354 = vmax.f32 %v290, 0.0
        %v355 = vmax.f32 %v291, 0.0
        %v356 = vmax.f32 %v292, 0.0
        %v357 = vmax.f32 %v293, 0.0
        %v358 = vmax.f32 %v294, 0.0
        %v359 = vmax.f32 %v295, 0.0
        %v360 = vmax.f32 %v296, 0.0
        %v361 = vmax.f32 %v297, 0.0
        %v362 = vmax.f32 %v298, 0.0
        %v363 = vmax.f32 %v299, 0.0
        %v364 = vmax.f32 %v300, 0.0
        %v365 = vmax.f32 %v301, 0.0
        %v366 = vmax.f32 %v302, 0.0
        %v367 = vmax.f32 %v303, 0.0
        %v368 = vmax.f32 %v304, 0.0
        %v369 = vmax.f32 %v305, 0.0
        %v370 = vmax.f32 %v306, 0.0
        %v371 = vmax.f32 %v307, 0.0
        %v372 = vpack.c.bf16 %v309, %v308
        %v373 = vpack.c.bf16 %v311, %v310
        %v374 = vpack.c.bf16 %v313, %v312
        %v375 = vpack.c.bf16 %v315, %v314
        %v376 = vpack.c.bf16 %v317, %v316
        %v377 = vpack.c.bf16 %v319, %v318
        %v378 = vpack.c.bf16 %v321, %v320
        %v379 = vpack.c.bf16 %v323, %v322
        %v380 = vpack.c.bf16 %v325, %v324
        %v381 = vpack.c.bf16 %v327, %v326
        %v382 = vpack.c.bf16 %v329, %v328
        %v383 = vpack.c.bf16 %v331, %v330
        %v384 = vpack.c.bf16 %v333, %v332
        %v385 = vpack.c.bf16 %v335, %v334
        %v386 = vpack.c.bf16 %v337, %v336
        %v387 = vpack.c.bf16 %v339, %v338
        %v388 = vpack.c.bf16 %v341, %v340
        %v389 = vpack.c.bf16 %v343, %v342
        %v390 = vpack.c.bf16 %v345, %v344
        %v391 = vpack.c.bf16 %v347, %v346
        %v392 = vpack.c.bf16 %v349, %v348
        %v393 = vpack.c.bf16 %v351, %v350
        %v394 = vpack.c.bf16 %v353, %v352
        %v395 = vpack.c.bf16 %v355, %v354
        %v396 = vpack.c.bf16 %v357, %v356
        %v397 = vpack.c.bf16 %v359, %v358
        %v398 = vpack.c.bf16 %v361, %v360
        %v399 = vpack.c.bf16 %v363, %v362
        %v400 = vpack.c.bf16 %v365, %v364
        %v401 = vpack.c.bf16 %v367, %v366
        %v402 = vpack.c.bf16 %v369, %v368
        %v403 = vpack.c.bf16 %v371, %v370
        %v404 = vld [vmem:[#allocation5] sm:$0xf]
        %v405 = vld [vmem:[#allocation5 + $0x4] sm:$0xf]
        %v406 = vld [vmem:[#allocation5 + $0x8] sm:$0xf]
        %v407 = vld [vmem:[#allocation5 + $0xc] sm:$0xf]
        %v408 = vld [vmem:[#allocation5 + $0x10] sm:$0xf]
        %v409 = vld [vmem:[#allocation5 + $0x14] sm:$0xf]
        %v410 = vld [vmem:[#allocation5 + $0x18] sm:$0xf]
        %v411 = vld [vmem:[#allocation5 + $0x1c] sm:$0xf]
        %v412 = vld [vmem:[#allocation5 + $0x20] sm:$0xf]
        %v413 = vld [vmem:[#allocation5 + $0x24] sm:$0xf]
        %v414 = vld [vmem:[#allocation5 + $0x28] sm:$0xf]
        %v415 = vld [vmem:[#allocation5 + $0x2c] sm:$0xf]
        %v416 = vld [vmem:[#allocation5 + $0x30] sm:$0xf]
        %v417 = vld [vmem:[#allocation5 + $0x34] sm:$0xf]
        %v418 = vld [vmem:[#allocation5 + $0x38] sm:$0xf]
        %v419 = vld [vmem:[#allocation5 + $0x3c] sm:$0xf]
        %v420 = vld [vmem:[%s241] sm:$0x1]
        %v422 = vlaneseq
        %v423 = vshrl.u32 %v422, 7
        %v424 = vsub.s32 0, %v423
        %v425 = vrot.slane %v420, %v424
        %v443 = vunpack.c.l.b16 %v404
        %v444 = vunpack.c.l.b16 %v405
        %v445 = vunpack.c.l.b16 %v406
        %v446 = vunpack.c.l.b16 %v407
        %v447 = vunpack.c.l.b16 %v408
        %v448 = vunpack.c.l.b16 %v409
        %v449 = vunpack.c.l.b16 %v410
        %v450 = vunpack.c.l.b16 %v411
        %v451 = vunpack.c.l.b16 %v412
        %v452 = vunpack.c.l.b16 %v413
        %v453 = vunpack.c.l.b16 %v414
        %v454 = vunpack.c.l.b16 %v415
        %v455 = vunpack.c.l.b16 %v416
        %v456 = vunpack.c.l.b16 %v417
        %v457 = vunpack.c.l.b16 %v418
        %v458 = vunpack.c.l.b16 %v419
        %v459 = vpack.c.b16 %v444, %v443
        %v460 = vpack.c.b16 %v446, %v445
        %v461 = vpack.c.b16 %v448, %v447
        %v462 = vpack.c.b16 %v450, %v449
        %v463 = vpack.c.b16 %v452, %v451
        %v464 = vpack.c.b16 %v454, %v453
        %v465 = vpack.c.b16 %v456, %v455
        %v466 = vpack.c.b16 %v458, %v457
        %475 = vmatprep.subr.bf16.mxu0 0
        %476 = vmatpush1.bf16.xpose.msra.mxu0 %v459
        %477 = vmatprep.subr.bf16.mxu0 0
        %478 = vmatpush1.bf16.xpose.msra.mxu0 %v460
        %479 = vmatprep.subr.bf16.mxu0 0
        %480 = vmatpush1.bf16.xpose.msra.mxu0 %v461
        %481 = vmatprep.subr.bf16.mxu0 0
        %482 = vmatpush1.bf16.xpose.msra.mxu0 %v462
        %483 = vmatprep.subr.bf16.mxu0 0
        %484 = vmatpush1.bf16.xpose.msra.mxu0 %v463
        %485 = vmatprep.subr.bf16.mxu0 0
        %486 = vmatpush1.bf16.xpose.msra.mxu0 %v464
        %487 = vmatprep.subr.bf16.mxu0 0
        %488 = vmatpush1.bf16.xpose.msra.mxu0 %v465
        %489 = vmatprep.subr.bf16.mxu0 0
        %490 = vmatpush1.bf16.xpose.msra.mxu0 %v466
        %491 = vmatprep.subr.bf16.mxu0 0
        %492 = vmatpush1.bf16.xpose.msra.mxu0 0
        %493 = vmatprep.subr.bf16.mxu0 0
        %494 = vmatpush1.bf16.xpose.msra.mxu0 0
        %495 = vmatprep.subr.bf16.mxu0 0
        %496 = vmatpush1.bf16.xpose.msra.mxu0 0
        %497 = vmatprep.subr.bf16.mxu0 0
        %498 = vmatpush1.bf16.xpose.msra.mxu0 0
        %499 = vmatprep.subr.bf16.mxu0 0
        %500 = vmatpush1.bf16.xpose.msra.mxu0 0
        %501 = vmatprep.subr.bf16.mxu0 0
        %502 = vmatpush1.bf16.xpose.msra.mxu0 0
        %503 = vmatprep.subr.bf16.mxu0 0
        %504 = vmatpush1.bf16.xpose.msra.mxu0 0
        %505 = vmatprep.subr.bf16.mxu0 0
        %506 = vmatpush1.bf16.xpose.msra.mxu0 0
        %507 = vmatprep.mubr.bf16.mxu0 0
        %508 = vmatmul.mubr.bf16.gmra.mrb[0].mxu0 %v372
        %v509 = vpop.f32.mrb[0].mxu0
        %v510 = vadd.f32 %v425, %v509
        %v511 = vpop.f32.mrb[0].mxu0
        %v512 = vpop.f32.mrb[0].mxu0
        %v513 = vadd.f32 %v425, %v512
        %v514 = vpop.f32.mrb[0].mxu0
        %515 = vmatprep.mubr.bf16.mxu0 0
        %516 = vmatmul.mubr.bf16.gmra.mrb[0].mxu0 %v373
        %v517 = vpop.f32.mrb[0].mxu0
        %v518 = vadd.f32 %v425, %v517
        %v519 = vpop.f32.mrb[0].mxu0
        %v520 = vpop.f32.mrb[0].mxu0
        %v521 = vadd.f32 %v425, %v520
        %v522 = vpop.f32.mrb[0].mxu0
        %523 = vmatprep.mubr.bf16.mxu0 0
        %524 = vmatmul.mubr.bf16.gmra.mrb[0].mxu0 %v374
        %v525 = vpop.f32.mrb[0].mxu0
        %v526 = vadd.f32 %v425, %v525
        %v527 = vpop.f32.mrb[0].mxu0
        %v528 = vpop.f32.mrb[0].mxu0
        %v529 = vadd.f32 %v425, %v528
        %v530 = vpop.f32.mrb[0].mxu0
        %531 = vmatprep.mubr.bf16.mxu0 0
        %532 = vmatmul.mubr.bf16.gmra.mrb[0].mxu0 %v375
        %v533 = vpop.f32.mrb[0].mxu0
        %v534 = vadd.f32 %v425, %v533
        %v535 = vpop.f32.mrb[0].mxu0
        %v536 = vpop.f32.mrb[0].mxu0
        %v537 = vadd.f32 %v425, %v536
        %v538 = vpop.f32.mrb[0].mxu0
        %539 = vmatprep.mubr.bf16.mxu0 0
        %540 = vmatmul.mubr.bf16.gmra.mrb[0].mxu0 %v376
        %v541 = vpop.f32.mrb[0].mxu0
        %v542 = vadd.f32 %v425, %v541
        %v543 = vpop.f32.mrb[0].mxu0
        %v544 = vpop.f32.mrb[0].mxu0
        %v545 = vadd.f32 %v425, %v544
        %v546 = vpop.f32.mrb[0].mxu0
        %547 = vmatprep.mubr.bf16.mxu0 0
        %548 = vmatmul.mubr.bf16.gmra.mrb[0].mxu0 %v377
        %v549 = vpop.f32.mrb[0].mxu0
        %v550 = vadd.f32 %v425, %v549
        %v551 = vpop.f32.mrb[0].mxu0
        %v552 = vpop.f32.mrb[0].mxu0
        %v553 = vadd.f32 %v425, %v552
        %v554 = vpop.f32.mrb[0].mxu0
        %555 = vmatprep.mubr.bf16.mxu0 0
        %556 = vmatmul.mubr.bf16.gmra.mrb[0].mxu0 %v378
        %v557 = vpop.f32.mrb[0].mxu0
        %v558 = vadd.f32 %v425, %v557
        %v559 = vpop.f32.mrb[0].mxu0
        %v560 = vpop.f32.mrb[0].mxu0
        %v561 = vadd.f32 %v425, %v560
        %v562 = vpop.f32.mrb[0].mxu0
        %563 = vmatprep.mubr.bf16.mxu0 0
        %564 = vmatmul.mubr.bf16.gmra.mrb[0].mxu0 %v379
        %v565 = vpop.f32.mrb[0].mxu0
        %v566 = vadd.f32 %v425, %v565
        %v567 = vpop.f32.mrb[0].mxu0
        %v568 = vpop.f32.mrb[0].mxu0
        %v569 = vadd.f32 %v425, %v568
        %v570 = vpop.f32.mrb[0].mxu0
        %571 = vmatprep.mubr.bf16.mxu0 0
        %572 = vmatmul.mubr.bf16.gmra.mrb[0].mxu0 %v380
        %v573 = vpop.f32.mrb[0].mxu0
        %v574 = vadd.f32 %v425, %v573
        %v575 = vpop.f32.mrb[0].mxu0
        %v576 = vpop.f32.mrb[0].mxu0
        %v577 = vadd.f32 %v425, %v576
        %v578 = vpop.f32.mrb[0].mxu0
        %579 = vmatprep.mubr.bf16.mxu0 0
        %580 = vmatmul.mubr.bf16.gmra.mrb[0].mxu0 %v381
        %v581 = vpop.f32.mrb[0].mxu0
        %v582 = vadd.f32 %v425, %v581
        %v583 = vpop.f32.mrb[0].mxu0
        %v584 = vpop.f32.mrb[0].mxu0
        %v585 = vadd.f32 %v425, %v584
        %v586 = vpop.f32.mrb[0].mxu0
        %587 = vmatprep.mubr.bf16.mxu0 0
        %588 = vmatmul.mubr.bf16.gmra.mrb[0].mxu0 %v382
        %v589 = vpop.f32.mrb[0].mxu0
        %v590 = vadd.f32 %v425, %v589
        %v591 = vpop.f32.mrb[0].mxu0
        %v592 = vpop.f32.mrb[0].mxu0
        %v593 = vadd.f32 %v425, %v592
        %v594 = vpop.f32.mrb[0].mxu0
        %595 = vmatprep.mubr.bf16.mxu0 0
        %596 = vmatmul.mubr.bf16.gmra.mrb[0].mxu0 %v383
        %v597 = vpop.f32.mrb[0].mxu0
        %v598 = vadd.f32 %v425, %v597
        %v599 = vpop.f32.mrb[0].mxu0
        %v600 = vpop.f32.mrb[0].mxu0
        %v601 = vadd.f32 %v425, %v600
        %v602 = vpop.f32.mrb[0].mxu0
        %603 = vmatprep.mubr.bf16.mxu0 0
        %604 = vmatmul.mubr.bf16.gmra.mrb[0].mxu0 %v384
        %v605 = vpop.f32.mrb[0].mxu0
        %v606 = vadd.f32 %v425, %v605
        %v607 = vpop.f32.mrb[0].mxu0
        %v608 = vpop.f32.mrb[0].mxu0
        %v609 = vadd.f32 %v425, %v608
        %v610 = vpop.f32.mrb[0].mxu0
        %611 = vmatprep.mubr.bf16.mxu0 0
        %612 = vmatmul.mubr.bf16.gmra.mrb[0].mxu0 %v385
        %v613 = vpop.f32.mrb[0].mxu0
        %v614 = vadd.f32 %v425, %v613
        %v615 = vpop.f32.mrb[0].mxu0
        %v616 = vpop.f32.mrb[0].mxu0
        %v617 = vadd.f32 %v425, %v616
        %v618 = vpop.f32.mrb[0].mxu0
        %619 = vmatprep.mubr.bf16.mxu0 0
        %620 = vmatmul.mubr.bf16.gmra.mrb[0].mxu0 %v386
        %v621 = vpop.f32.mrb[0].mxu0
        %v622 = vadd.f32 %v425, %v621
        %v623 = vpop.f32.mrb[0].mxu0
        %v624 = vpop.f32.mrb[0].mxu0
        %v625 = vadd.f32 %v425, %v624
        %v626 = vpop.f32.mrb[0].mxu0
        %627 = vmatprep.mubr.bf16.mxu0 0
        %628 = vmatmul.mubr.bf16.gmra.mrb[0].mxu0 %v387
        %v629 = vpop.f32.mrb[0].mxu0
        %v630 = vadd.f32 %v425, %v629
        %v631 = vpop.f32.mrb[0].mxu0
        %v632 = vpop.f32.mrb[0].mxu0
        %v633 = vadd.f32 %v425, %v632
        %v634 = vpop.f32.mrb[0].mxu0
        %635 = vmatprep.mubr.bf16.mxu0 0
        %636 = vmatmul.mubr.bf16.gmra.mrb[0].mxu0 %v388
        %v637 = vpop.f32.mrb[0].mxu0
        %v638 = vadd.f32 %v425, %v637
        %v639 = vpop.f32.mrb[0].mxu0
        %v640 = vpop.f32.mrb[0].mxu0
        %v641 = vadd.f32 %v425, %v640
        %v642 = vpop.f32.mrb[0].mxu0
        %643 = vmatprep.mubr.bf16.mxu0 0
        %644 = vmatmul.mubr.bf16.gmra.mrb[0].mxu0 %v389
        %v645 = vpop.f32.mrb[0].mxu0
        %v646 = vadd.f32 %v425, %v645
        %v647 = vpop.f32.mrb[0].mxu0
        %v648 = vpop.f32.mrb[0].mxu0
        %v649 = vadd.f32 %v425, %v648
        %v650 = vpop.f32.mrb[0].mxu0
        %651 = vmatprep.mubr.bf16.mxu0 0
        %652 = vmatmul.mubr.bf16.gmra.mrb[0].mxu0 %v390
        %v653 = vpop.f32.mrb[0].mxu0
        %v654 = vadd.f32 %v425, %v653
        %v655 = vpop.f32.mrb[0].mxu0
        %v656 = vpop.f32.mrb[0].mxu0
        %v657 = vadd.f32 %v425, %v656
        %v658 = vpop.f32.mrb[0].mxu0
        %659 = vmatprep.mubr.bf16.mxu0 0
        %660 = vmatmul.mubr.bf16.gmra.mrb[0].mxu0 %v391
        %v661 = vpop.f32.mrb[0].mxu0
        %v662 = vadd.f32 %v425, %v661
        %v663 = vpop.f32.mrb[0].mxu0
        %v664 = vpop.f32.mrb[0].mxu0
        %v665 = vadd.f32 %v425, %v664
        %v666 = vpop.f32.mrb[0].mxu0
        %667 = vmatprep.mubr.bf16.mxu0 0
        %668 = vmatmul.mubr.bf16.gmra.mrb[0].mxu0 %v392
        %v669 = vpop.f32.mrb[0].mxu0
        %v670 = vadd.f32 %v425, %v669
        %v671 = vpop.f32.mrb[0].mxu0
        %v672 = vpop.f32.mrb[0].mxu0
        %v673 = vadd.f32 %v425, %v672
        %v674 = vpop.f32.mrb[0].mxu0
        %675 = vmatprep.mubr.bf16.mxu0 0
        %676 = vmatmul.mubr.bf16.gmra.mrb[0].mxu0 %v393
        %v677 = vpop.f32.mrb[0].mxu0
        %v678 = vadd.f32 %v425, %v677
        %v679 = vpop.f32.mrb[0].mxu0
        %v680 = vpop.f32.mrb[0].mxu0
        %v681 = vadd.f32 %v425, %v680
        %v682 = vpop.f32.mrb[0].mxu0
        %683 = vmatprep.mubr.bf16.mxu0 0
        %684 = vmatmul.mubr.bf16.gmra.mrb[0].mxu0 %v394
        %v685 = vpop.f32.mrb[0].mxu0
        %v686 = vadd.f32 %v425, %v685
        %v687 = vpop.f32.mrb[0].mxu0
        %v688 = vpop.f32.mrb[0].mxu0
        %v689 = vadd.f32 %v425, %v688
        %v690 = vpop.f32.mrb[0].mxu0
        %691 = vmatprep.mubr.bf16.mxu0 0
        %692 = vmatmul.mubr.bf16.gmra.mrb[0].mxu0 %v395
        %v693 = vpop.f32.mrb[0].mxu0
        %v694 = vadd.f32 %v425, %v693
        %v695 = vpop.f32.mrb[0].mxu0
        %v696 = vpop.f32.mrb[0].mxu0
        %v697 = vadd.f32 %v425, %v696
        %v698 = vpop.f32.mrb[0].mxu0
        %699 = vmatprep.mubr.bf16.mxu0 0
        %700 = vmatmul.mubr.bf16.gmra.mrb[0].mxu0 %v396
        %v701 = vpop.f32.mrb[0].mxu0
        %v702 = vadd.f32 %v425, %v701
        %v703 = vpop.f32.mrb[0].mxu0
        %v704 = vpop.f32.mrb[0].mxu0
        %v705 = vadd.f32 %v425, %v704
        %v706 = vpop.f32.mrb[0].mxu0
        %707 = vmatprep.mubr.bf16.mxu0 0
        %708 = vmatmul.mubr.bf16.gmra.mrb[0].mxu0 %v397
        %v709 = vpop.f32.mrb[0].mxu0
        %v710 = vadd.f32 %v425, %v709
        %v711 = vpop.f32.mrb[0].mxu0
        %v712 = vpop.f32.mrb[0].mxu0
        %v713 = vadd.f32 %v425, %v712
        %v714 = vpop.f32.mrb[0].mxu0
        %715 = vmatprep.mubr.bf16.mxu0 0
        %716 = vmatmul.mubr.bf16.gmra.mrb[0].mxu0 %v398
        %v717 = vpop.f32.mrb[0].mxu0
        %v718 = vadd.f32 %v425, %v717
        %v719 = vpop.f32.mrb[0].mxu0
        %v720 = vpop.f32.mrb[0].mxu0
        %v721 = vadd.f32 %v425, %v720
        %v722 = vpop.f32.mrb[0].mxu0
        %723 = vmatprep.mubr.bf16.mxu0 0
        %724 = vmatmul.mubr.bf16.gmra.mrb[0].mxu0 %v399
        %v725 = vpop.f32.mrb[0].mxu0
        %v726 = vadd.f32 %v425, %v725
        %v727 = vpop.f32.mrb[0].mxu0
        %v728 = vpop.f32.mrb[0].mxu0
        %v729 = vadd.f32 %v425, %v728
        %v730 = vpop.f32.mrb[0].mxu0
        %731 = vmatprep.mubr.bf16.mxu0 0
        %732 = vmatmul.mubr.bf16.gmra.mrb[0].mxu0 %v400
        %v733 = vpop.f32.mrb[0].mxu0
        %v734 = vadd.f32 %v425, %v733
        %v735 = vpop.f32.mrb[0].mxu0
        %v736 = vpop.f32.mrb[0].mxu0
        %v737 = vadd.f32 %v425, %v736
        %v738 = vpop.f32.mrb[0].mxu0
        %739 = vmatprep.mubr.bf16.mxu0 0
        %740 = vmatmul.mubr.bf16.gmra.mrb[0].mxu0 %v401
        %v741 = vpop.f32.mrb[0].mxu0
        %v742 = vadd.f32 %v425, %v741
        %v743 = vpop.f32.mrb[0].mxu0
        %v744 = vpop.f32.mrb[0].mxu0
        %v745 = vadd.f32 %v425, %v744
        %v746 = vpop.f32.mrb[0].mxu0
        %747 = vmatprep.mubr.bf16.mxu0 0
        %748 = vmatmul.mubr.bf16.gmra.mrb[0].mxu0 %v402
        %v749 = vpop.f32.mrb[0].mxu0
        %v750 = vadd.f32 %v425, %v749
        %v751 = vpop.f32.mrb[0].mxu0
        %v752 = vpop.f32.mrb[0].mxu0
        %v753 = vadd.f32 %v425, %v752
        %v754 = vpop.f32.mrb[0].mxu0
        %755 = vmatprep.mubr.bf16.mxu0 0
        %756 = vmatmul.mubr.bf16.gmra.mrb[0].mxu0 %v403
        %v757 = vpop.f32.mrb[0].mxu0
        %v758 = vadd.f32 %v425, %v757
        %v759 = vpop.f32.mrb[0].mxu0
        %v760 = vpop.f32.mrb[0].mxu0
        %v761 = vadd.f32 %v425, %v760
        %v762 = vpop.f32.mrb[0].mxu0
        %763 = vdwg.mxu0
        %v764 = vadd.f32 %v510, %v244
        %v765 = vadd.f32 %v513, %v245
        %v766 = vadd.f32 %v518, %v246
        %v767 = vadd.f32 %v521, %v247
        %v768 = vadd.f32 %v526, %v248
        %v769 = vadd.f32 %v529, %v249
        %v770 = vadd.f32 %v534, %v250
        %v771 = vadd.f32 %v537, %v251
        %v772 = vadd.f32 %v542, %v252
        %v773 = vadd.f32 %v545, %v253
        %v774 = vadd.f32 %v550, %v254
        %v775 = vadd.f32 %v553, %v255
        %v776 = vadd.f32 %v558, %v256
        %v777 = vadd.f32 %v561, %v257
        %v778 = vadd.f32 %v566, %v258
        %v779 = vadd.f32 %v569, %v259
        %v780 = vadd.f32 %v574, %v260
        %v781 = vadd.f32 %v577, %v261
        %v782 = vadd.f32 %v582, %v262
        %v783 = vadd.f32 %v585, %v263
        %v784 = vadd.f32 %v590, %v264
        %v785 = vadd.f32 %v593, %v265
        %v786 = vadd.f32 %v598, %v266
        %v787 = vadd.f32 %v601, %v267
        %v788 = vadd.f32 %v606, %v268
        %v789 = vadd.f32 %v609, %v269
        %v790 = vadd.f32 %v614, %v270
        %v791 = vadd.f32 %v617, %v271
        %v792 = vadd.f32 %v622, %v272
        %v793 = vadd.f32 %v625, %v273
        %v794 = vadd.f32 %v630, %v274
        %v795 = vadd.f32 %v633, %v275
        %v796 = vadd.f32 %v638, %v276
        %v797 = vadd.f32 %v641, %v277
        %v798 = vadd.f32 %v646, %v278
        %v799 = vadd.f32 %v649, %v279
        %v800 = vadd.f32 %v654, %v280
        %v801 = vadd.f32 %v657, %v281
        %v802 = vadd.f32 %v662, %v282
        %v803 = vadd.f32 %v665, %v283
        %v804 = vadd.f32 %v670, %v284
        %v805 = vadd.f32 %v673, %v285
        %v806 = vadd.f32 %v678, %v286
        %v807 = vadd.f32 %v681, %v287
        %v808 = vadd.f32 %v686, %v288
        %v809 = vadd.f32 %v689, %v289
        %v810 = vadd.f32 %v694, %v290
        %v811 = vadd.f32 %v697, %v291
        %v812 = vadd.f32 %v702, %v292
        %v813 = vadd.f32 %v705, %v293
        %v814 = vadd.f32 %v710, %v294
        %v815 = vadd.f32 %v713, %v295
        %v816 = vadd.f32 %v718, %v296
        %v817 = vadd.f32 %v721, %v297
        %v818 = vadd.f32 %v726, %v298
        %v819 = vadd.f32 %v729, %v299
        %v820 = vadd.f32 %v734, %v300
        %v821 = vadd.f32 %v737, %v301
        %v822 = vadd.f32 %v742, %v302
        %v823 = vadd.f32 %v745, %v303
        %v824 = vadd.f32 %v750, %v304
        %v825 = vadd.f32 %v753, %v305
        %v826 = vadd.f32 %v758, %v306
        %v827 = vadd.f32 %v761, %v307
        %828 = vst [vmem:[%s236] sm:$0xff] %v764
        %829 = vst [vmem:[%s236 + $0x8] sm:$0xff] %v765
        %830 = vst [vmem:[%s236 + $0x10] sm:$0xff] %v766
        %831 = vst [vmem:[%s236 + $0x18] sm:$0xff] %v767
        %832 = vst [vmem:[%s236 + $0x20] sm:$0xff] %v768
        %833 = vst [vmem:[%s236 + $0x28] sm:$0xff] %v769
        %834 = vst [vmem:[%s236 + $0x30] sm:$0xff] %v770
        %835 = vst [vmem:[%s236 + $0x38] sm:$0xff] %v771
        %836 = vst [vmem:[%s236 + $0x40] sm:$0xff] %v772
        %837 = vst [vmem:[%s236 + $0x48] sm:$0xff] %v773
        %838 = vst [vmem:[%s236 + $0x50] sm:$0xff] %v774
        %839 = vst [vmem:[%s236 + $0x58] sm:$0xff] %v775
        %840 = vst [vmem:[%s236 + $0x60] sm:$0xff] %v776
        %841 = vst [vmem:[%s236 + $0x68] sm:$0xff] %v777
        %842 = vst [vmem:[%s236 + $0x70] sm:$0xff] %v778
        %843 = vst [vmem:[%s236 + $0x78] sm:$0xff] %v779
        %844 = vst [vmem:[%s236 + $0x80] sm:$0xff] %v780
        %845 = vst [vmem:[%s236 + $0x88] sm:$0xff] %v781
        %846 = vst [vmem:[%s236 + $0x90] sm:$0xff] %v782
        %847 = vst [vmem:[%s236 + $0x98] sm:$0xff] %v783
        %848 = vst [vmem:[%s236 + $0xa0] sm:$0xff] %v784
        %849 = vst [vmem:[%s236 + $0xa8] sm:$0xff] %v785
        %850 = vst [vmem:[%s236 + $0xb0] sm:$0xff] %v786
        %851 = vst [vmem:[%s236 + $0xb8] sm:$0xff] %v787
        %852 = vst [vmem:[%s236 + $0xc0] sm:$0xff] %v788
        %853 = vst [vmem:[%s236 + $0xc8] sm:$0xff] %v789
        %854 = vst [vmem:[%s236 + $0xd0] sm:$0xff] %v790
        %855 = vst [vmem:[%s236 + $0xd8] sm:$0xff] %v791
        %856 = vst [vmem:[%s236 + $0xe0] sm:$0xff] %v792
        %857 = vst [vmem:[%s236 + $0xe8] sm:$0xff] %v793
        %858 = vst [vmem:[%s236 + $0xf0] sm:$0xff] %v794
        %859 = vst [vmem:[%s236 + $0xf8] sm:$0xff] %v795
        %860 = vst [vmem:[%s236 + $0x100] sm:$0xff] %v796
        %861 = vst [vmem:[%s236 + $0x108] sm:$0xff] %v797
        %862 = vst [vmem:[%s236 + $0x110] sm:$0xff] %v798
        %863 = vst [vmem:[%s236 + $0x118] sm:$0xff] %v799
        %864 = vst [vmem:[%s236 + $0x120] sm:$0xff] %v800
        %865 = vst [vmem:[%s236 + $0x128] sm:$0xff] %v801
        %866 = vst [vmem:[%s236 + $0x130] sm:$0xff] %v802
        %867 = vst [vmem:[%s236 + $0x138] sm:$0xff] %v803
        %868 = vst [vmem:[%s236 + $0x140] sm:$0xff] %v804
        %869 = vst [vmem:[%s236 + $0x148] sm:$0xff] %v805
        %870 = vst [vmem:[%s236 + $0x150] sm:$0xff] %v806
        %871 = vst [vmem:[%s236 + $0x158] sm:$0xff] %v807
        %872 = vst [vmem:[%s236 + $0x160] sm:$0xff] %v808
        %873 = vst [vmem:[%s236 + $0x168] sm:$0xff] %v809
        %874 = vst [vmem:[%s236 + $0x170] sm:$0xff] %v810
        %875 = vst [vmem:[%s236 + $0x178] sm:$0xff] %v811
        %876 = vst [vmem:[%s236 + $0x180] sm:$0xff] %v812
        %877 = vst [vmem:[%s236 + $0x188] sm:$0xff] %v813
        %878 = vst [vmem:[%s236 + $0x190] sm:$0xff] %v814
        %879 = vst [vmem:[%s236 + $0x198] sm:$0xff] %v815
        %880 = vst [vmem:[%s236 + $0x1a0] sm:$0xff] %v816
        %881 = vst [vmem:[%s236 + $0x1a8] sm:$0xff] %v817
        %882 = vst [vmem:[%s236 + $0x1b0] sm:$0xff] %v818
        %883 = vst [vmem:[%s236 + $0x1b8] sm:$0xff] %v819
        %884 = vst [vmem:[%s236 + $0x1c0] sm:$0xff] %v820
        %885 = vst [vmem:[%s236 + $0x1c8] sm:$0xff] %v821
        %886 = vst [vmem:[%s236 + $0x1d0] sm:$0xff] %v822
        %887 = vst [vmem:[%s236 + $0x1d8] sm:$0xff] %v823
        %888 = vst [vmem:[%s236 + $0x1e0] sm:$0xff] %v824
        %889 = vst [vmem:[%s236 + $0x1e8] sm:$0xff] %v825
        %890 = vst [vmem:[%s236 + $0x1f0] sm:$0xff] %v826
        %891 = vst [vmem:[%s236 + $0x1f8] sm:$0xff] %v827
        %s892 = sand.u32 %s121, 1
        %s893 = scalar_lea.sflag [#allocation4], %s892
        %s894 = sand.u32 %s121, 1
        %s895 = smul.addr %s894, 512
        %s896 = scalar_lea.vmem [#allocation7], %s895
        // Predicated region
        $region41: #{tpu_custom_call.1} parent=31 // pred_check
          %p897 = pneg %p131
        $region42: #{tpu_custom_call.1} parent=31 // pred_check_branch
          %899 = sbr.rel (%p897) target = $region44
        $region43: #{tpu_custom_call.1} parent=31 // pred_region
          %s900 = smul.u32 64, %s25
          %s902 = ssub.s32 8192, 8192
          %903 = vsyncadd %s893, %s902
          %s904 = sadd.s32 %s26, %s900
          %s905 = smul.addr %s904, 128
          %s906 = scalar_lea.hbm %s3, %s905
          %s907 = sshll.u32 %s896, 4
          %s908 = int_to_ptr.vmem [resolvable:$true] %s907
          %913 = dma.vmem_to_hbm [thread:$0]  %s908, 8192, %s906, %s893, 128, 128, 8
        $region44: #{tpu_custom_call.1} parent=31 // pred_fallthru
          _
      $region32: #{tpu_custom_call.1} parent=5 // pred_fallthru
        _
      %p914 = scmp.le.s32.totalorder 2, %s16
      // Predicated region
      $region45: #{tpu_custom_call.1} parent=5 // pred_check
        %p915 = pneg %p914
      $region46: #{tpu_custom_call.1} parent=5 // pred_check_branch
        %917 = sbr.rel (%p915) target = $region48
      $region47: #{tpu_custom_call.1} parent=5 // pred_region
        %s918 = ssub.s32 %s16, 2
        // Predicated region
        $region49: #{tpu_custom_call.1} parent=47 // pred_check
          %p919 = pneg %p137
        $region50: #{tpu_custom_call.1} parent=47 // pred_check_branch
          %921 = sbr.rel (%p919) target = $region52
        $region51: #{tpu_custom_call.1} parent=47 // pred_region
          %s922 = sand.u32 %s122, 1
          %s923 = scalar_lea.sflag [#allocation4], %s922
          %s924 = sand.u32 %s122, 1
          %s925 = smul.addr %s924, 512
          %s926 = scalar_lea.vmem [#allocation7], %s925
          %927 = dma.done %s923, 8192
        $region52: #{tpu_custom_call.1} parent=47 // pred_fallthru
          _
      $region48: #{tpu_custom_call.1} parent=5 // pred_fallthru
        _
    $region6: #{tpu_custom_call.1} parent=1 // loop_footer
      %s20 = sadd.s32 1, %s16
    $region7: #{tpu_custom_call.1} parent=1 // loop_footer_branch
      %15 = sbr.rel target = $region3
    $region8: #{tpu_custom_call.1} parent=1 // loop_exit
      _
    %928 = vsyncpa [#allocation3], 1
    %s929 = scalar_lea.sflag [#allocation3], 1
    %930 = vsyncpa %s929, 1
    %931 = vsyncpa [#allocation6], 1
    %932 = vsyncpa [#allocation4], 1
    %s933 = scalar_lea.sflag [#allocation4], 1
    %934 = vsyncpa %s933, 1

</llo_original>
